<compile_context>
chip_gen: v5e
topology: v5e:2x2
jax: 0.10.0
libtpu: 0.0.40
codegen_flags: <defaults>
</compile_context>

<pallas_src>
import jax
import jax.numpy as jnp
from jax.experimental import pallas as pl
from jax.experimental.pallas import tpu as pltpu


def _round_up(v: int, m: int) -> int:
    return ((v + m - 1) // m) * m


def _pad_to(a, shape):
    pads = tuple((0, t - s) for s, t in zip(a.shape, shape))
    if all(p == (0, 0) for p in pads):
        return a
    return jnp.pad(a, pads)


def _resblock_id_kernel(x_ref, w1_ref, b1_ref, w2_ref, b2_ref, o_ref):
    """out = relu(((x@W1+b1)@W2+b2) + x)  -- identity shortcut (ni == no)."""
    x = x_ref[...]
    h = jnp.dot(x, w1_ref[...], preferred_element_type=jnp.float32) + b1_ref[...]
    # Second matmul runs in the input dtype on the MXU, accumulates in f32.
    y = jnp.dot(h.astype(x.dtype), w2_ref[...],
                preferred_element_type=jnp.float32) + b2_ref[...]
    o_ref[...] = jnp.maximum(y + x.astype(jnp.float32), 0.0).astype(o_ref.dtype)


def _resblock_proj_kernel(x_ref, wcat_ref, bcat_ref, w2_ref, b2_ref, o_ref):
    """out = relu(((x@W1+b1)@W2+b2) + (x@Wid+bid)).

    The shortcut matmul is fused into the first matmul: a single MXU pass of
    x @ [W1 | Wid] produces [h | shortcut].
    """
    x = x_ref[...]
    z = jnp.dot(x, wcat_ref[...], preferred_element_type=jnp.float32) + bcat_ref[...]
    no_p = w2_ref.shape[0]                     # static, multiple of 128
    h, sc = z[:, :no_p], z[:, no_p:]           # lane-aligned split, no copies
    y = jnp.dot(h.astype(x.dtype), w2_ref[...],
                preferred_element_type=jnp.float32) + b2_ref[...]
    o_ref[...] = jnp.maximum(y + sc, 0.0).astype(o_ref.dtype)


def _vmem_limit_bytes(tb, ni_p, cat_cols, no_p, itemsize):
    # Resident weights/biases (conservatively counted double-buffered) +
    # double-buffered x/out tiles + f32 intermediates, with headroom.
    w_bytes = 2 * (ni_p * cat_cols + cat_cols + no_p * no_p + no_p) * itemsize
    io_bytes = 2 * tb * (ni_p + no_p) * itemsize
    tmp_bytes = tb * (cat_cols + no_p) * 4
    need = w_bytes + io_bytes + tmp_bytes
    return int(min(64 << 20, max(32 << 20, int(1.5 * need) + (2 << 20))))


def res_block(x, w1, b1, w2, b2, wid=None, bid=None, *,
              block_rows=512, compute_dtype=None):
    """ResBlock forward.

    x:   (B, ni)
    w1:  (ni, no), b1: (no,)     -- first Linear (weights pre-transposed vs torch)
    w2:  (no, no), b2: (no,)     -- second Linear
    wid: (ni, no), bid: (no,)    -- idconv Linear, or None for identity (ni == no)
    block_rows: batch-tile size (sweepable).
    compute_dtype: optional dtype for the MXU operands (e.g. jnp.bfloat16).
    """
    B, ni = x.shape
    no = w1.shape[1]
    assert w1.shape == (ni, no) and b1.shape == (no,)
    assert w2.shape == (no, no) and b2.shape == (no,)

    out_dtype = x.dtype
    mxu_dtype = out_dtype if compute_dtype is None else compute_dtype
    itemsize = jnp.dtype(mxu_dtype).itemsize

    # Lane-dense feature padding (multiples of 128).
    ni_p = max(_round_up(ni, 128), 128)
    no_p = max(_round_up(no, 128), 128)

    x_p = _pad_to(x, (B, ni_p)).astype(mxu_dtype)
    w2_p = _pad_to(w2, (no_p, no_p)).astype(mxu_dtype)
    b2_p = _pad_to(b2.reshape(1, no), (1, no_p))

    # Batch tile: 8-aligned; large enough to amortize per-step overhead, small
    # enough that the "parallel" grid has >= 2 steps when B allows (v7x megacore).
    if B <= 8:
        tb = B
    else:
        tb = min(block_rows, _round_up(pl.cdiv(B, 2), 8), _round_up(B, 8))
    grid = (pl.cdiv(B, tb),)

    x_spec = pl.BlockSpec((tb, ni_p), lambda i: (i, 0))
    o_spec = pl.BlockSpec((tb, no_p), lambda i: (i, 0))

    # Grid-invariant weights/biases: single-buffer to halve their VMEM footprint
    # (matters most on v7x's 64 MiB VMEM).
    def resident(shape):
        return pl.BlockSpec(shape, lambda i: (0, 0), pipeline_mode=pl.Buffered(1))

    w2_spec = resident((no_p, no_p))
    b2_spec = resident((1, no_p))

    if wid is None:
        assert ni == no, "identity shortcut requires ni == no"
        w1_p = _pad_to(w1, (ni_p, no_p)).astype(mxu_dtype)
        b1_p = _pad_to(b1.reshape(1, no), (1, no_p))

        flops = 2 * B * ni_p * no_p + 2 * B * no_p * no_p
        bytes_accessed = itemsize * (B * ni_p + ni_p * no_p + no_p * no_p
                                     + 2 * no_p + B * no_p)
        cparams = pltpu.CompilerParams(
            dimension_semantics=("parallel",),
            vmem_limit_bytes=_vmem_limit_bytes(tb, ni_p, no_p, no_p, itemsize))

        out_p = pl.pallas_call(
            _resblock_id_kernel,
            out_shape=jax.ShapeDtypeStruct((B, no_p), out_dtype),
            grid_spec=pltpu.PrefetchScalarGridSpec(
                num_scalar_prefetch=0,
                grid=grid,
                in_specs=[x_spec, resident((ni_p, no_p)), resident((1, no_p)),
                          w2_spec, b2_spec],
                out_specs=o_spec,
            ),
            compiler_params=cparams,
            cost_estimate=pl.CostEstimate(flops=flops, transcendentals=0,
                                          bytes_accessed=bytes_accessed),
        )(x_p, w1_p, b1_p, w2_p, b2_p)
    else:
        assert wid.shape == (ni, no) and bid is not None and bid.shape == (no,)
        # Fuse shortcut matmul into the first matmul: x @ [W1 | Wid] + [b1 | bid].
        wcat = jnp.concatenate(
            [_pad_to(w1, (ni_p, no_p)), _pad_to(wid, (ni_p, no_p))],
            axis=1).astype(mxu_dtype)                          # (ni_p, 2*no_p)
        bcat = jnp.concatenate(
            [_pad_to(b1.reshape(1, no), (1, no_p)),
             _pad_to(bid.reshape(1, no), (1, no_p))], axis=1)  # (1, 2*no_p)
        cat_cols = 2 * no_p

        flops = 2 * B * ni_p * cat_cols + 2 * B * no_p * no_p
        bytes_accessed = itemsize * (B * ni_p + ni_p * cat_cols + no_p * no_p
                                     + cat_cols + no_p + B * no_p)
        cparams = pltpu.CompilerParams(
            dimension_semantics=("parallel",),
            vmem_limit_bytes=_vmem_limit_bytes(tb, ni_p, cat_cols, no_p, itemsize))

        out_p = pl.pallas_call(
            _resblock_proj_kernel,
            out_shape=jax.ShapeDtypeStruct((B, no_p), out_dtype),
            grid_spec=pltpu.PrefetchScalarGridSpec(
                num_scalar_prefetch=0,
                grid=grid,
                in_specs=[x_spec, resident((ni_p, cat_cols)), resident((1, cat_cols)),
                          w2_spec, b2_spec],
                out_specs=o_spec,
            ),
            compiler_params=cparams,
            cost_estimate=pl.CostEstimate(flops=flops, transcendentals=0,
                                          bytes_accessed=bytes_accessed),
        )(x_p, wcat, bcat, w2_p, b2_p)

    return out_p if no_p == no else out_p[:, :no]


if __name__ == "__main__":
    key = jax.random.PRNGKey(0)
    kx, k1, kb1, k2, kb2, k3, kb3 = jax.random.split(key, 7)

    # ResBlock with projection shortcut: ni != no.
    B, ni, no = 8, 32, 64
    x = jax.random.normal(kx, (B, ni), dtype=jnp.float32)
    w1 = jax.random.normal(k1, (ni, no), dtype=jnp.float32) * (2.0 / ni) ** 0.5
    b1 = jax.random.normal(kb1, (no,), dtype=jnp.float32) * 0.1
    w2 = jax.random.normal(k2, (no, no), dtype=jnp.float32) * (2.0 / no) ** 0.5
    b2 = jax.random.normal(kb2, (no,), dtype=jnp.float32) * 0.1
    wid = jax.random.normal(k3, (ni, no), dtype=jnp.float32) * (2.0 / ni) ** 0.5
    bid = jax.random.normal(kb3, (no,), dtype=jnp.float32) * 0.1

    out = res_block(x, w1, b1, w2, b2, wid, bid)
    jax.block_until_ready(out)
    ref = jnp.maximum((x @ w1 + b1) @ w2 + b2 + (x @ wid + bid), 0.0)
    assert out.shape == ref.shape
    assert jnp.allclose(out, ref, rtol=1e-5, atol=1e-5)

    # ResBlock with identity shortcut: ni == no (idconv = noop).
    x2 = jax.random.normal(kx, (B, no), dtype=jnp.float32)
    w1b = jax.random.normal(k1, (no, no), dtype=jnp.float32) * (2.0 / no) ** 0.5
    out2 = res_block(x2, w1b, b1, w2, b2)
    jax.block_until_ready(out2)
    ref2 = jnp.maximum((x2 @ w1b + b1) @ w2 + b2 + x2, 0.0)
    assert jnp.allclose(out2, ref2, rtol=1e-5, atol=1e-5)

    # Multi-tile batch (exercises grid > 1 and a partial last tile).
    B3 = 1040
    x3 = jax.random.normal(kx, (B3, ni), dtype=jnp.float32)
    out3 = res_block(x3, w1, b1, w2, b2, wid, bid)
    jax.block_until_ready(out3)
    ref3 = jnp.maximum((x3 @ w1 + b1) @ w2 + b2 + (x3 @ wid + bid), 0.0)
    assert jnp.allclose(out3, ref3, rtol=1e-5, atol=1e-5)

    print("KERNEL_OK")
</pallas_src>

<mosaic_0001>
module attributes {stable_mosaic.version = 11 : i64} {
  func.func @_resblock_proj_kernel(%arg0: i32, %arg1: memref<8x128xf32, #tpu.memory_space<vmem>>, %arg2: memref<128x256xf32, #tpu.memory_space<vmem>>, %arg3: memref<1x256xf32, #tpu.memory_space<vmem>>, %arg4: memref<128x128xf32, #tpu.memory_space<vmem>>, %arg5: memref<1x128xf32, #tpu.memory_space<vmem>>, %arg6: memref<8x128xf32, #tpu.memory_space<vmem>>) attributes {dimension_semantics = [#tpu.dimension_semantics<parallel>], iteration_bounds = array<i64: 1>, scalar_prefetch = 0 : i64, scratch_operands = 0 : i64, tpu.core_type = #tpu.core_type<tc>, window_params = [{transform_indices = @transform_0, window_bounds = array<i64: 8, 128>}, {pipeline_mode = #tpu.pipeline_mode<synchronous>, transform_indices = @transform_1, window_bounds = array<i64: 128, 256>}, {pipeline_mode = #tpu.pipeline_mode<synchronous>, transform_indices = @transform_2, window_bounds = array<i64: 1, 256>}, {pipeline_mode = #tpu.pipeline_mode<synchronous>, transform_indices = @transform_3, window_bounds = array<i64: 128, 128>}, {pipeline_mode = #tpu.pipeline_mode<synchronous>, transform_indices = @transform_4, window_bounds = array<i64: 1, 128>}, {transform_indices = @transform_5, window_bounds = array<i64: 8, 128>}]} {
    %c0 = arith.constant 0 : index
    %c0_0 = arith.constant 0 : index
    %0 = vector.load %arg1[%c0, %c0_0] : memref<8x128xf32, #tpu.memory_space<vmem>>, vector<8x128xf32>
    %c0_1 = arith.constant 0 : index
    %c0_2 = arith.constant 0 : index
    %1 = vector.load %arg2[%c0_1, %c0_2] : memref<128x256xf32, #tpu.memory_space<vmem>>, vector<128x256xf32>
    %cst = arith.constant dense<0.000000e+00> : vector<8x256xf32>
    %2 = tpu.matmul %0, %1, %cst {dimension_numbers = #tpu.dot_dimension_numbers<[1], [0], [0], [1], [0, 0, 1, 1], [], []>} : vector<8x128xf32>, vector<128x256xf32>, vector<8x256xf32> -> vector<8x256xf32>
    %c0_3 = arith.constant 0 : index
    %c0_4 = arith.constant 0 : index
    %3 = vector.load %arg3[%c0_3, %c0_4] : memref<1x256xf32, #tpu.memory_space<vmem>>, vector<1x256xf32>
    %4 = vector.broadcast %3 : vector<1x256xf32> to vector<8x256xf32>
    %5 = arith.addf %2, %4 : vector<8x256xf32>
    %6 = vector.extract_strided_slice %5 {offsets = [0, 0], sizes = [8, 128], strides = [1, 1]} : vector<8x256xf32> to vector<8x128xf32>
    %7 = vector.extract_strided_slice %5 {offsets = [0, 128], sizes = [8, 128], strides = [1, 1]} : vector<8x256xf32> to vector<8x128xf32>
    %c0_5 = arith.constant 0 : index
    %c0_6 = arith.constant 0 : index
    %8 = vector.load %arg4[%c0_5, %c0_6] : memref<128x128xf32, #tpu.memory_space<vmem>>, vector<128x128xf32>
    %cst_7 = arith.constant dense<0.000000e+00> : vector<8x128xf32>
    %9 = tpu.matmul %6, %8, %cst_7 {dimension_numbers = #tpu.dot_dimension_numbers<[1], [0], [0], [1], [0, 0, 1, 1], [], []>} : vector<8x128xf32>, vector<128x128xf32>, vector<8x128xf32> -> vector<8x128xf32>
    %c0_8 = arith.constant 0 : index
    %c0_9 = arith.constant 0 : index
    %10 = vector.load %arg5[%c0_8, %c0_9] : memref<1x128xf32, #tpu.memory_space<vmem>>, vector<1x128xf32>
    %11 = vector.broadcast %10 : vector<1x128xf32> to vector<8x128xf32>
    %12 = arith.addf %9, %11 : vector<8x128xf32>
    %13 = arith.addf %12, %7 : vector<8x128xf32>
    %cst_10 = arith.constant 0.000000e+00 : f32
    %14 = vector.broadcast %cst_10 : f32 to vector<8x128xf32>
    %15 = arith.maximumf %13, %14 : vector<8x128xf32>
    %c0_11 = arith.constant 0 : index
    %c0_12 = arith.constant 0 : index
    %16 = vector.load %arg6[%c0_11, %c0_12] : memref<8x128xf32, #tpu.memory_space<vmem>>, vector<8x128xf32>
    tpu.vector_store %arg6[%c0_11, %c0_12], %15 {strides = array<i32>} : memref<8x128xf32, #tpu.memory_space<vmem>>, vector<8x128xf32>,
    return
  }
  func.func @transform_0(%arg0: i32) -> (i32, i32) {
    %c0_i32 = arith.constant 0 : i32
    %c0_i32_0 = arith.constant 0 : i32
    return %arg0, %c0_i32 : i32, i32
  }
  func.func @transform_1(%arg0: i32) -> (i32, i32) {
    %c0_i32 = arith.constant 0 : i32
    %c0_i32_0 = arith.constant 0 : i32
    %c0_i32_1 = arith.constant 0 : i32
    return %c0_i32, %c0_i32_0 : i32, i32
  }
  func.func @transform_2(%arg0: i32) -> (i32, i32) {
    %c0_i32 = arith.constant 0 : i32
    %c0_i32_0 = arith.constant 0 : i32
    %c0_i32_1 = arith.constant 0 : i32
    return %c0_i32, %c0_i32_0 : i32, i32
  }
  func.func @transform_3(%arg0: i32) -> (i32, i32) {
    %c0_i32 = arith.constant 0 : i32
    %c0_i32_0 = arith.constant 0 : i32
    %c0_i32_1 = arith.constant 0 : i32
    return %c0_i32, %c0_i32_0 : i32, i32
  }
  func.func @transform_4(%arg0: i32) -> (i32, i32) {
    %c0_i32 = arith.constant 0 : i32
    %c0_i32_0 = arith.constant 0 : i32
    %c0_i32_1 = arith.constant 0 : i32
    return %c0_i32, %c0_i32_0 : i32, i32
  }
  func.func @transform_5(%arg0: i32) -> (i32, i32) {
    %c0_i32 = arith.constant 0 : i32
    %c0_i32_0 = arith.constant 0 : i32
    return %arg0, %c0_i32 : i32, i32
  }
}

</mosaic_0001>

<llo_original>
// kernel: tpu_custom_call.1
$region0: #{tpu_custom_call.1}
  #allocation0 [shape = 'u32[]', space=smem, size = 0x4, offset = 0x4, fixed_abs, tag = 'smem constant byte address 0x4 - core index']
  #allocation1 [shape = 'u32[72,128]{1,0:T(1,128)}', space=vmem, size = 0x9000, scoped, tag = 'internal scratch']
  %s0 = inlined_call_operand.hbm [shape: f32[8,128], index: 0, kind: input, shape index: {}]
  %s1 = inlined_call_operand.hbm [shape: f32[128,256], index: 1, kind: input, shape index: {}]
  %s2 = inlined_call_operand.hbm [shape: f32[1,256], index: 2, kind: input, shape index: {}]
  %s3 = inlined_call_operand.hbm [shape: f32[128,128], index: 3, kind: input, shape index: {}]
  %s4 = inlined_call_operand.vmem [shape: f32[1,128], index: 4, kind: input, shape index: {}]
  %s5 = inlined_call_operand.hbm [shape: f32[8,128], index: 5, kind: output, shape index: {}]
  %s6 = sld [smem:[#allocation0]]
  $region46: #{tpu_custom_call.1} parent=0
    _
  %s8 = ssub.s32 1, %s6
  %s9 = scalar_select 0, %s8, %s6
  $region1: #{tpu_custom_call.1} parent=0
    #allocation2 [shape = 'u8[4096]{0}', space=vmem, size = 0x1000, scoped, tag = 'input window, operand 0, single buffered']
    #allocation3 [shape = 's32[1]{0}', space=sflag, size = 0x4, scoped, tag = 'scoped memory for tpu_custom_call.1']
    #allocation4 [shape = 's32[1]{0}', space=sflag, size = 0x4, scoped, tag = 'scoped memory for tpu_custom_call.1']
    #allocation5 [shape = 'u8[131072]{0}', space=vmem, size = 0x20000, scoped, tag = 'input window, operand 1, single buffered']
    #allocation6 [shape = 's32[1]{0}', space=sflag, size = 0x4, scoped, tag = 'scoped memory for tpu_custom_call.1']
    #allocation7 [shape = 'u8[1024]{0}', space=vmem, size = 0x400, scoped, tag = 'input window, operand 2, single buffered']
    #allocation8 [shape = 'u8[65536]{0}', space=vmem, size = 0x10000, scoped, tag = 'input window, operand 3, single buffered']
    #allocation9 [shape = 's32[1]{0}', space=sflag, size = 0x4, scoped, tag = 'scoped memory for tpu_custom_call.1']
    #allocation10 [shape = 'u8[4096]{0}', space=vmem, size = 0x1000, scoped, tag = 'output window, operand 0, single buffered']
    %10 = vsyncpa [#allocation3], 0
    %11 = vsyncpa [#allocation6], 0
    %12 = vsyncpa [#allocation9], 0
    %13 = vsyncpa [#allocation4], 0
    // Predicated region
    $region2: #{tpu_custom_call.1} parent=1 // pred_check
      _
    $region3: #{tpu_custom_call.1} parent=1 // pred_check_branch
      %15 = sbr.rel (0) target = $region5
    $region4: #{tpu_custom_call.1} parent=1 // pred_region
      %17 = vsyncadd [#allocation3], 0
      %s19 = sshll.u32 %s0, 4
      %s20 = int_to_ptr.hbm [resolvable:$true] %s19
      %s21 = sshll.u32 [#allocation2], 4
      %s22 = int_to_ptr.vmem [resolvable:$true] %s21
      %24 = dma.hbm_to_vmem [thread:$0]  %s20, 128, %s22, [#allocation3]
    $region5: #{tpu_custom_call.1} parent=1 // pred_fallthru
      _
    // Predicated region
    $region6: #{tpu_custom_call.1} parent=1 // pred_check
      _
    $region7: #{tpu_custom_call.1} parent=1 // pred_check_branch
      %26 = sbr.rel (0) target = $region9
    $region8: #{tpu_custom_call.1} parent=1 // pred_region
      %28 = vsyncadd [#allocation6], 0
      %s29 = sshll.u32 %s1, 4
      %s30 = int_to_ptr.hbm [resolvable:$true] %s29
      %s31 = sshll.u32 [#allocation5], 4
      %s32 = int_to_ptr.vmem [resolvable:$true] %s31
      %37 = dma.hbm_to_vmem [thread:$0]  %s30, 4096, %s32, [#allocation6], 256, 256, 16
    $region9: #{tpu_custom_call.1} parent=1 // pred_fallthru
      _
    // Predicated region
    $region10: #{tpu_custom_call.1} parent=1 // pred_check
      _
    $region11: #{tpu_custom_call.1} parent=1 // pred_check_branch
      %39 = sbr.rel (0) target = $region13
    $region12: #{tpu_custom_call.1} parent=1 // pred_region
      %41 = vsyncadd [#allocation6], 0
      %s43 = sshll.u32 %s2, 4
      %s44 = int_to_ptr.hbm [resolvable:$true] %s43
      %s45 = sshll.u32 [#allocation7], 4
      %s46 = int_to_ptr.vmem [resolvable:$true] %s45
      %48 = dma.hbm_to_vmem [thread:$0]  %s44, 32, %s46, [#allocation6]
    $region13: #{tpu_custom_call.1} parent=1 // pred_fallthru
      _
    // Predicated region
    $region14: #{tpu_custom_call.1} parent=1 // pred_check
      _
    $region15: #{tpu_custom_call.1} parent=1 // pred_check_branch
      %50 = sbr.rel (0) target = $region17
    $region16: #{tpu_custom_call.1} parent=1 // pred_region
      %52 = vsyncadd [#allocation9], 0
      %s53 = sshll.u32 %s3, 4
      %s54 = int_to_ptr.hbm [resolvable:$true] %s53
      %s55 = sshll.u32 [#allocation8], 4
      %s56 = int_to_ptr.vmem [resolvable:$true] %s55
      %61 = dma.hbm_to_vmem [thread:$0]  %s54, 2048, %s56, [#allocation9], 128, 128, 8
    $region17: #{tpu_custom_call.1} parent=1 // pred_fallthru
      _
    // Predicated region
    $region18: #{tpu_custom_call.1} parent=1 // pred_check
      _
    $region19: #{tpu_custom_call.1} parent=1 // pred_check_branch
      %63 = sbr.rel (0) target = $region21
    $region20: #{tpu_custom_call.1} parent=1 // pred_region
      _
    $region21: #{tpu_custom_call.1} parent=1 // pred_fallthru
      _
    // Predicated region
    $region22: #{tpu_custom_call.1} parent=1 // pred_check
      _
    $region23: #{tpu_custom_call.1} parent=1 // pred_check_branch
      %65 = sbr.rel (0) target = $region25
    $region24: #{tpu_custom_call.1} parent=1 // pred_region
      %67 = dma.done [#allocation3], 128
    $region25: #{tpu_custom_call.1} parent=1 // pred_fallthru
      _
    // Predicated region
    $region26: #{tpu_custom_call.1} parent=1 // pred_check
      _
    $region27: #{tpu_custom_call.1} parent=1 // pred_check_branch
      %69 = sbr.rel (0) target = $region29
    $region28: #{tpu_custom_call.1} parent=1 // pred_region
      %71 = dma.done [#allocation6], 4096
    $region29: #{tpu_custom_call.1} parent=1 // pred_fallthru
      _
    // Predicated region
    $region30: #{tpu_custom_call.1} parent=1 // pred_check
      _
    $region31: #{tpu_custom_call.1} parent=1 // pred_check_branch
      %73 = sbr.rel (0) target = $region33
    $region32: #{tpu_custom_call.1} parent=1 // pred_region
      %75 = dma.done [#allocation6], 32
    $region33: #{tpu_custom_call.1} parent=1 // pred_fallthru
      _
    // Predicated region
    $region34: #{tpu_custom_call.1} parent=1 // pred_check
      _
    $region35: #{tpu_custom_call.1} parent=1 // pred_check_branch
      %77 = sbr.rel (0) target = $region37
    $region36: #{tpu_custom_call.1} parent=1 // pred_region
      %79 = dma.done [#allocation9], 2048
    $region37: #{tpu_custom_call.1} parent=1 // pred_fallthru
      _
    %v80 = vld [vmem:[#allocation2] sm:$0xff]
    %v81 = vld [vmem:[#allocation5] sm:$0xff]
    %v82 = vld [vmem:[#allocation5 + $0x8] sm:$0xff]
    %v83 = vld [vmem:[#allocation5 + $0x10] sm:$0xff]
    %v84 = vld [vmem:[#allocation5 + $0x18] sm:$0xff]
    %v85 = vld [vmem:[#allocation5 + $0x20] sm:$0xff]
    %v86 = vld [vmem:[#allocation5 + $0x28] sm:$0xff]
    %v87 = vld [vmem:[#allocation5 + $0x30] sm:$0xff]
    %v88 = vld [vmem:[#allocation5 + $0x38] sm:$0xff]
    %v89 = vld [vmem:[#allocation5 + $0x40] sm:$0xff]
    %v90 = vld [vmem:[#allocation5 + $0x48] sm:$0xff]
    %v91 = vld [vmem:[#allocation5 + $0x50] sm:$0xff]
    %v92 = vld [vmem:[#allocation5 + $0x58] sm:$0xff]
    %v93 = vld [vmem:[#allocation5 + $0x60] sm:$0xff]
    %v94 = vld [vmem:[#allocation5 + $0x68] sm:$0xff]
    %v95 = vld [vmem:[#allocation5 + $0x70] sm:$0xff]
    %v96 = vld [vmem:[#allocation5 + $0x78] sm:$0xff]
    %v97 = vld [vmem:[#allocation5 + $0x80] sm:$0xff]
    %v98 = vld [vmem:[#allocation5 + $0x88] sm:$0xff]
    %v99 = vld [vmem:[#allocation5 + $0x90] sm:$0xff]
    %v100 = vld [vmem:[#allocation5 + $0x98] sm:$0xff]
    %v101 = vld [vmem:[#allocation5 + $0xa0] sm:$0xff]
    %v102 = vld [vmem:[#allocation5 + $0xa8] sm:$0xff]
    %v103 = vld [vmem:[#allocation5 + $0xb0] sm:$0xff]
    %v104 = vld [vmem:[#allocation5 + $0xb8] sm:$0xff]
    %v105 = vld [vmem:[#allocation5 + $0xc0] sm:$0xff]
    %v106 = vld [vmem:[#allocation5 + $0xc8] sm:$0xff]
    %v107 = vld [vmem:[#allocation5 + $0xd0] sm:$0xff]
    %v108 = vld [vmem:[#allocation5 + $0xd8] sm:$0xff]
    %v109 = vld [vmem:[#allocation5 + $0xe0] sm:$0xff]
    %v110 = vld [vmem:[#allocation5 + $0xe8] sm:$0xff]
    %v111 = vld [vmem:[#allocation5 + $0xf0] sm:$0xff]
    %v112 = vld [vmem:[#allocation5 + $0xf8] sm:$0xff]
    %v113 = vld [vmem:[#allocation7] sm:$0x3]
    %v115 = vperm.slane %v113, 0
    %v116 = vperm.slane %v113, 1
    %119 = vmatpush.msra.mxu0 %v111
    %120 = vmatpush.msra.mxu0 %v109
    %121 = vmatpush.msra.mxu0 %v107
    %122 = vmatpush.msra.mxu0 %v105
    %123 = vmatpush.msra.mxu0 %v103
    %124 = vmatpush.msra.mxu0 %v101
    %125 = vmatpush.msra.mxu0 %v99
    %126 = vmatpush.msra.mxu0 %v97
    %127 = vmatpush.msra.mxu0 %v95
    %128 = vmatpush.msra.mxu0 %v93
    %129 = vmatpush.msra.mxu0 %v91
    %130 = vmatpush.msra.mxu0 %v89
    %131 = vmatpush.msra.mxu0 %v87
    %132 = vmatpush.msra.mxu0 %v85
    %133 = vmatpush.msra.mxu0 %v83
    %134 = vmatpush.msra.mxu0 %v81
    %135 = vmatmul.f32.gmra.mxu0 %v80
    %v136 = vpop.f32.mrf.mxu0
    %v137 = vadd.f32 %v115, %v136
    %138 = vdwg.mxu0
    %139 = vmatpush.msra.mxu0 %v112
    %140 = vmatpush.msra.mxu0 %v110
    %141 = vmatpush.msra.mxu0 %v108
    %142 = vmatpush.msra.mxu0 %v106
    %143 = vmatpush.msra.mxu0 %v104
    %144 = vmatpush.msra.mxu0 %v102
    %145 = vmatpush.msra.mxu0 %v100
    %146 = vmatpush.msra.mxu0 %v98
    %147 = vmatpush.msra.mxu0 %v96
    %148 = vmatpush.msra.mxu0 %v94
    %149 = vmatpush.msra.mxu0 %v92
    %150 = vmatpush.msra.mxu0 %v90
    %151 = vmatpush.msra.mxu0 %v88
    %152 = vmatpush.msra.mxu0 %v86
    %153 = vmatpush.msra.mxu0 %v84
    %154 = vmatpush.msra.mxu0 %v82
    %155 = vmatmul.f32.gmra.mxu0 %v80
    %v156 = vpop.f32.mrf.mxu0
    %v157 = vadd.f32 %v116, %v156
    %158 = vdwg.mxu0
    %v159 = vld [vmem:[#allocation8] sm:$0xff]
    %v160 = vld [vmem:[#allocation8 + $0x8] sm:$0xff]
    %v161 = vld [vmem:[#allocation8 + $0x10] sm:$0xff]
    %v162 = vld [vmem:[#allocation8 + $0x18] sm:$0xff]
    %v163 = vld [vmem:[#allocation8 + $0x20] sm:$0xff]
    %v164 = vld [vmem:[#allocation8 + $0x28] sm:$0xff]
    %v165 = vld [vmem:[#allocation8 + $0x30] sm:$0xff]
    %v166 = vld [vmem:[#allocation8 + $0x38] sm:$0xff]
    %v167 = vld [vmem:[#allocation8 + $0x40] sm:$0xff]
    %v168 = vld [vmem:[#allocation8 + $0x48] sm:$0xff]
    %v169 = vld [vmem:[#allocation8 + $0x50] sm:$0xff]
    %v170 = vld [vmem:[#allocation8 + $0x58] sm:$0xff]
    %v171 = vld [vmem:[#allocation8 + $0x60] sm:$0xff]
    %v172 = vld [vmem:[#allocation8 + $0x68] sm:$0xff]
    %v173 = vld [vmem:[#allocation8 + $0x70] sm:$0xff]
    %v174 = vld [vmem:[#allocation8 + $0x78] sm:$0xff]
    %v175 = vld [vmem:[%s4] sm:$0x1]
    %v177 = vperm.slane %v175, 0
    %179 = vmatpush.msra.mxu0 %v174
    %180 = vmatpush.msra.mxu0 %v173
    %181 = vmatpush.msra.mxu0 %v172
    %182 = vmatpush.msra.mxu0 %v171
    %183 = vmatpush.msra.mxu0 %v170
    %184 = vmatpush.msra.mxu0 %v169
    %185 = vmatpush.msra.mxu0 %v168
    %186 = vmatpush.msra.mxu0 %v167
    %187 = vmatpush.msra.mxu0 %v166
    %188 = vmatpush.msra.mxu0 %v165
    %189 = vmatpush.msra.mxu0 %v164
    %190 = vmatpush.msra.mxu0 %v163
    %191 = vmatpush.msra.mxu0 %v162
    %192 = vmatpush.msra.mxu0 %v161
    %193 = vmatpush.msra.mxu0 %v160
    %194 = vmatpush.msra.mxu0 %v159
    %195 = vmatmul.f32.gmra.mxu0 %v137
    %v196 = vpop.f32.mrf.mxu0
    %v197 = vadd.f32 %v177, %v196
    %198 = vdwg.mxu0
    %v199 = vadd.f32 %v197, %v157
    %v200 = vmax.f32 %v199, 0.0
    %201 = vst [vmem:[#allocation10] sm:$0xff] %v200
    // Predicated region
    $region38: #{tpu_custom_call.1} parent=1 // pred_check
      _
    $region39: #{tpu_custom_call.1} parent=1 // pred_check_branch
      %203 = sbr.rel (0) target = $region41
    $region40: #{tpu_custom_call.1} parent=1 // pred_region
      %205 = vsyncadd [#allocation4], 0
      %s207 = sshll.u32 [#allocation10], 4
      %s208 = int_to_ptr.vmem [resolvable:$true] %s207
      %s209 = sshll.u32 %s5, 4
      %s210 = int_to_ptr.hbm [resolvable:$true] %s209
      %212 = dma.vmem_to_hbm [thread:$0]  %s208, 128, %s210, [#allocation4]
    $region41: #{tpu_custom_call.1} parent=1 // pred_fallthru
      _
    // Predicated region
    $region42: #{tpu_custom_call.1} parent=1 // pred_check
      _
    $region43: #{tpu_custom_call.1} parent=1 // pred_check_branch
      %214 = sbr.rel (0) target = $region45
    $region44: #{tpu_custom_call.1} parent=1 // pred_region
      %216 = dma.done [#allocation4], 128
    $region45: #{tpu_custom_call.1} parent=1 // pred_fallthru
      _
    %217 = vsyncpa [#allocation3], 1
    %218 = vsyncpa [#allocation6], 1
    %219 = vsyncpa [#allocation9], 1
    %220 = vsyncpa [#allocation4], 1

</llo_original>
